<compile_context>
chip_gen: v5e
topology: v5e:2x2
jax: 0.10.0
libtpu: 0.0.40
codegen_flags: <defaults>
</compile_context>

<pallas_src>
import jax
import jax.numpy as jnp
from jax.experimental import pallas as pl
from jax.experimental.pallas import tpu as pltpu


_TARGET_BLOCK_BYTES = 4 * 1024 * 1024   # ~4 MiB blocks: >=85% HBM roofline on v6e,
                                        # safe on v7x's 64 MiB VMEM; raise on v5e/v6e.


# ----------------------------- Pallas kernels ------------------------------

def _excite(gap_f32, w1t_ref, w2t_ref):
    """Squeeze/excite MLP on the pooled (B, C) matrix, all in f32 on the MXU."""
    h = jnp.dot(gap_f32, w1t_ref[...].astype(jnp.float32),
                preferred_element_type=jnp.float32)            # (B, C_mid)
    h = jnp.maximum(h, 0.0)
    g = jnp.dot(h, w2t_ref[...].astype(jnp.float32),
                preferred_element_type=jnp.float32)            # (B, C)
    return jax.nn.sigmoid(g)


def _se_kernel_hw_lanes(x_ref, w1t_ref, w2t_ref, o_ref):
    # x_ref/o_ref: (B_blk, C, HW)  -- channels on sublanes, spatial on lanes.
    # w1t_ref: (C, C_mid), w2t_ref: (C_mid, C)
    xb = x_ref[...]                                            # native dtype, in VMEM
    inv_hw = 1.0 / float(xb.shape[2])
    # GAP: cast folded into the lane reduction, accumulate in f32.
    gap = jnp.sum(xb.astype(jnp.float32), axis=2) * inv_hw     # (B, C) f32
    g = _excite(gap, w1t_ref, w2t_ref)                         # (B, C) f32
    # Rescale in the native dtype; gate broadcast across the lane (spatial) axis.
    o_ref[...] = xb * g.astype(xb.dtype)[:, :, None]


def _se_kernel_c_lanes(x_ref, w1t_ref, w2t_ref, o_ref):
    # x_ref/o_ref: (B_blk, HW, C)  -- spatial on sublanes, channels on lanes.
    xb = x_ref[...]
    inv_hw = 1.0 / float(xb.shape[1])
    gap = jnp.sum(xb.astype(jnp.float32), axis=1) * inv_hw     # (B, C) f32
    g = _excite(gap, w1t_ref, w2t_ref)                         # (B, C) f32
    o_ref[...] = xb * g.astype(xb.dtype)[:, None, :]


# ----------------------------- core wrapper --------------------------------

def _choose_batch_block(n, per_image_bytes, target_bytes):
    b = max(1, min(n, target_bytes // max(1, per_image_bytes)))
    if n >= 2:
        b = min(b, -(-n // 2))   # keep grid length >= 2 (v7x megacore: 2 TCs/chip)
    return b


def _se_core(x3, w1t, w2t, *, spatial_last, target_block_bytes):
    """x3: (N, C, HW) if spatial_last else (N, HW, C); w1t: (C, C_mid); w2t: (C_mid, C)."""
    n, d1, d2 = x3.shape
    c, c_mid = w1t.shape
    hw = d2 if spatial_last else d1
    itemsize = jnp.dtype(x3.dtype).itemsize

    # --- batch blocking + tail padding ---
    per_image = d1 * d2 * itemsize
    b_blk = _choose_batch_block(n, per_image, target_block_bytes)
    n_pad = -(-n // b_blk) * b_blk
    if n_pad != n:
        # Zero padding is harmless: gap=0 -> gate=0.5 -> out = 0 * 0.5 = 0, sliced off.
        x3 = jnp.concatenate([x3, jnp.zeros((n_pad - n, d1, d2), x3.dtype)], axis=0)
    grid = (n_pad // b_blk,)

    # --- VMEM budget: 2x double-buffered in + out blocks + weights + headroom ---
    block_bytes = b_blk * per_image
    vmem_limit = int(min(60 * 1024 * 1024,
                         max(32 * 1024 * 1024, 4 * block_bytes + 4 * 1024 * 1024)))
    # NOTE: for very large single-image feature maps (per_image > target) this stays a
    # one-image-per-step kernel; a spatial-tiled two-pass (GAP accumulate, then scale)
    # pipeline would be needed beyond ~10 MiB/image, which SE-module stages never hit.

    w_bytes = 2 * c * c_mid * jnp.dtype(w1t.dtype).itemsize
    cost = pl.CostEstimate(
        flops=2 * n * c * hw + 4 * n * c * c_mid,   # GAP + rescale + 2 tiny matmuls
        transcendentals=n * c,                      # sigmoid
        bytes_accessed=2 * n * per_image + w_bytes)

    kernel = _se_kernel_hw_lanes if spatial_last else _se_kernel_c_lanes

    out = pl.pallas_call(
        kernel,
        out_shape=jax.ShapeDtypeStruct((n_pad, d1, d2), x3.dtype),
        grid=grid,
        in_specs=[
            pl.BlockSpec((b_blk, d1, d2), lambda i: (i, 0, 0),
                         memory_space=pltpu.MemorySpace.VMEM),
            pl.BlockSpec((c, c_mid), lambda i: (0, 0),
                         memory_space=pltpu.MemorySpace.VMEM),
            pl.BlockSpec((c_mid, c), lambda i: (0, 0),
                         memory_space=pltpu.MemorySpace.VMEM),
        ],
        out_specs=pl.BlockSpec((b_blk, d1, d2), lambda i: (i, 0, 0),
                               memory_space=pltpu.MemorySpace.VMEM),
        compiler_params=pltpu.CompilerParams(
            dimension_semantics=("parallel",),
            vmem_limit_bytes=vmem_limit),
        cost_estimate=cost,
    )(x3, w1t, w2t)

    return out[:n] if n_pad != n else out


# ----------------------------- public wrappers ------------------------------

def se_module(x_nchw, fc1_w, fc2_w, *, target_block_bytes=_TARGET_BLOCK_BYTES):
    """SEModule forward, NCHW input.  Spatial (H*W) on the lane axis.

    x_nchw : (N, C, H, W)
    fc1_w  : (C_mid, C)  == PyTorch fc1.weight[:, :, 0, 0]
    fc2_w  : (C, C_mid)  == PyTorch fc2.weight[:, :, 0, 0]
    """
    n, c, h, w = x_nchw.shape
    x3 = x_nchw.reshape(n, c, h * w)        # pure view: NCHW is already channel-major
    out = _se_core(x3, fc1_w.T, fc2_w.T, spatial_last=True,
                   target_block_bytes=target_block_bytes)
    return out.reshape(n, c, h, w)


def se_module_nhwc(x_nhwc, fc1_w, fc2_w, *, target_block_bytes=_TARGET_BLOCK_BYTES):
    """SEModule forward, NHWC input.  Channels on the lane axis.

    Lane-dense variant for deep iresnet stages where H*W < 128 (7x7, 14x14) and
    C in {128, 256, 512}: every load/store is an unmasked, lane-dense vst and no
    layout transpose is needed as long as the caller keeps activations in NHWC.
    """
    n, h, w, c = x_nhwc.shape
    x3 = x_nhwc.reshape(n, h * w, c)        # pure view
    out = _se_core(x3, fc1_w.T, fc2_w.T, spatial_last=False,
                   target_block_bytes=target_block_bytes)
    return out.reshape(n, h, w, c)


# ----------------------------- references & test ----------------------------

def _se_reference_nchw(x, fc1_w, fc2_w):
    gap = jnp.mean(x, axis=(2, 3))                              # (N, C)
    h = jnp.maximum(gap @ fc1_w.T, 0.0)                         # (N, C_mid)
    g = jax.nn.sigmoid(h @ fc2_w.T)                             # (N, C)
    return x * g[:, :, None, None]


def _se_reference_nhwc(x, fc1_w, fc2_w):
    gap = jnp.mean(x, axis=(1, 2))                              # (N, C)
    h = jnp.maximum(gap @ fc1_w.T, 0.0)
    g = jax.nn.sigmoid(h @ fc2_w.T)
    return x * g[:, None, None, :]


if __name__ == "__main__":
    key = jax.random.PRNGKey(0)
    kx1, kx2, k1, k2, k3, k4 = jax.random.split(key, 6)

    # --- Early-stage shape (HW = 256 lane-dense): NCHW / spatial-on-lanes path. ---
    N, C, H, W = 2, 64, 16, 16
    C_mid = C // 4
    x = jax.random.normal(kx1, (N, C, H, W), jnp.float32)
    fc1_w = 0.1 * jax.random.normal(k1, (C_mid, C), jnp.float32)
    fc2_w = 0.1 * jax.random.normal(k2, (C, C_mid), jnp.float32)

    out = jax.block_until_ready(jax.jit(se_module)(x, fc1_w, fc2_w))
    ref = _se_reference_nchw(x, fc1_w, fc2_w)
    assert out.shape == x.shape, out.shape
    assert bool(jnp.all(jnp.isfinite(out)))
    assert bool(jnp.allclose(out, ref, atol=1e-5, rtol=1e-5)), \
        float(jnp.max(jnp.abs(out - ref)))

    # --- Deep-stage shape (HW = 49 < 128): NHWC / channels-on-lanes path.
    #     N=5 also exercises batch blocking (B_blk=3) + tail-block zero padding. ---
    N2, H2, W2, C2 = 5, 7, 7, 128
    C2_mid = C2 // 8
    x2 = jax.random.normal(kx2, (N2, H2, W2, C2), jnp.float32)
    fc1_w2 = 0.1 * jax.random.normal(k3, (C2_mid, C2), jnp.float32)
    fc2_w2 = 0.1 * jax.random.normal(k4, (C2, C2_mid), jnp.float32)

    out2 = jax.block_until_ready(jax.jit(se_module_nhwc)(x2, fc1_w2, fc2_w2))
    ref2 = _se_reference_nhwc(x2, fc1_w2, fc2_w2)
    assert out2.shape == x2.shape, out2.shape
    assert bool(jnp.all(jnp.isfinite(out2)))
    assert bool(jnp.allclose(out2, ref2, atol=1e-5, rtol=1e-5)), \
        float(jnp.max(jnp.abs(out2 - ref2)))

    print("KERNEL_OK")
</pallas_src>

<mosaic_0001>
module attributes {stable_mosaic.version = 11 : i64} {
  func.func @_se_kernel_hw_lanes(%arg0: i32, %arg1: memref<1x64x256xf32, #tpu.memory_space<vmem>>, %arg2: memref<64x16xf32, #tpu.memory_space<vmem>>, %arg3: memref<16x64xf32, #tpu.memory_space<vmem>>, %arg4: memref<1x64x256xf32, #tpu.memory_space<vmem>>) attributes {dimension_semantics = [#tpu.dimension_semantics<parallel>], iteration_bounds = array<i64: 2>, scalar_prefetch = 0 : i64, scratch_operands = 0 : i64, tpu.core_type = #tpu.core_type<tc>, window_params = [{transform_indices = @transform_0, window_bounds = array<i64: 1, 64, 256>}, {pipeline_mode = #tpu.pipeline_mode<synchronous>, transform_indices = @transform_1, window_bounds = array<i64: 64, 16>}, {pipeline_mode = #tpu.pipeline_mode<synchronous>, transform_indices = @transform_2, window_bounds = array<i64: 16, 64>}, {transform_indices = @transform_3, window_bounds = array<i64: 1, 64, 256>}]} {
    %c0 = arith.constant 0 : index
    %c0_0 = arith.constant 0 : index
    %c0_1 = arith.constant 0 : index
    %0 = vector.load %arg1[%c0, %c0_0, %c0_1] : memref<1x64x256xf32, #tpu.memory_space<vmem>>, vector<1x64x256xf32>
    %cst = arith.constant dense<0.000000e+00> : vector<1x64xf32>
    %1 = vector.multi_reduction <add>, %0, %cst [2] : vector<1x64x256xf32> to vector<1x64xf32>
    %cst_2 = arith.constant 3.906250e-03 : f32
    %2 = vector.broadcast %cst_2 : f32 to vector<1x64xf32>
    %3 = arith.mulf %1, %2 : vector<1x64xf32>
    %c0_3 = arith.constant 0 : index
    %c0_4 = arith.constant 0 : index
    %4 = vector.load %arg2[%c0_3, %c0_4] : memref<64x16xf32, #tpu.memory_space<vmem>>, vector<64x16xf32>
    %cst_5 = arith.constant dense<0.000000e+00> : vector<1x16xf32>
    %5 = tpu.matmul %3, %4, %cst_5 {dimension_numbers = #tpu.dot_dimension_numbers<[1], [0], [0], [1], [0, 0, 1, 1], [], []>} : vector<1x64xf32>, vector<64x16xf32>, vector<1x16xf32> -> vector<1x16xf32>
    %cst_6 = arith.constant 0.000000e+00 : f32
    %6 = vector.broadcast %cst_6 : f32 to vector<1x16xf32>
    %7 = arith.maximumf %5, %6 : vector<1x16xf32>
    %c0_7 = arith.constant 0 : index
    %c0_8 = arith.constant 0 : index
    %8 = vector.load %arg3[%c0_7, %c0_8] : memref<16x64xf32, #tpu.memory_space<vmem>>, vector<16x64xf32>
    %cst_9 = arith.constant dense<0.000000e+00> : vector<1x64xf32>
    %9 = tpu.matmul %7, %8, %cst_9 {dimension_numbers = #tpu.dot_dimension_numbers<[1], [0], [0], [1], [0, 0, 1, 1], [], []>} : vector<1x16xf32>, vector<16x64xf32>, vector<1x64xf32> -> vector<1x64xf32>
    %10 = arith.negf %9 : vector<1x64xf32>
    %11 = math.exp %10 : vector<1x64xf32>
    %cst_10 = arith.constant 1.000000e+00 : f32
    %12 = vector.broadcast %cst_10 : f32 to vector<1x64xf32>
    %13 = arith.addf %12, %11 : vector<1x64xf32>
    %14 = arith.divf %12, %13 : vector<1x64xf32>
    %15 = vector.shape_cast %14 : vector<1x64xf32> to vector<1x64x1xf32>
    %16 = vector.broadcast %15 : vector<1x64x1xf32> to vector<1x64x256xf32>
    %17 = arith.mulf %0, %16 : vector<1x64x256xf32>
    %c0_11 = arith.constant 0 : index
    %c0_12 = arith.constant 0 : index
    %c0_13 = arith.constant 0 : index
    %18 = vector.load %arg4[%c0_11, %c0_12, %c0_13] : memref<1x64x256xf32, #tpu.memory_space<vmem>>, vector<1x64x256xf32>
    tpu.vector_store %arg4[%c0_11, %c0_12, %c0_13], %17 {strides = array<i32>} : memref<1x64x256xf32, #tpu.memory_space<vmem>>, vector<1x64x256xf32>,
    return
  }
  func.func @transform_0(%arg0: i32) -> (i32, i32, i32) {
    %c0_i32 = arith.constant 0 : i32
    %c0_i32_0 = arith.constant 0 : i32
    %c0_i32_1 = arith.constant 0 : i32
    return %arg0, %c0_i32, %c0_i32_0 : i32, i32, i32
  }
  func.func @transform_1(%arg0: i32) -> (i32, i32) {
    %c0_i32 = arith.constant 0 : i32
    %c0_i32_0 = arith.constant 0 : i32
    %c0_i32_1 = arith.constant 0 : i32
    return %c0_i32, %c0_i32_0 : i32, i32
  }
  func.func @transform_2(%arg0: i32) -> (i32, i32) {
    %c0_i32 = arith.constant 0 : i32
    %c0_i32_0 = arith.constant 0 : i32
    %c0_i32_1 = arith.constant 0 : i32
    return %c0_i32, %c0_i32_0 : i32, i32
  }
  func.func @transform_3(%arg0: i32) -> (i32, i32, i32) {
    %c0_i32 = arith.constant 0 : i32
    %c0_i32_0 = arith.constant 0 : i32
    %c0_i32_1 = arith.constant 0 : i32
    return %arg0, %c0_i32, %c0_i32_0 : i32, i32, i32
  }
}

</mosaic_0001>

<llo_original>
// kernel: se_module.1
$region0: #{se_module.1}
  #allocation0 [shape = 'u32[]', space=smem, size = 0x4, offset = 0x4, fixed_abs, tag = 'smem constant byte address 0x4 - core index']
  #allocation1 [shape = 'u32[72,128]{1,0:T(1,128)}', space=vmem, size = 0x9000, scoped, tag = 'internal scratch']
  %s0 = inlined_call_operand.vmem [shape: f32[2,64,256], index: 0, kind: input, shape index: {}]
  %s1 = inlined_call_operand.vmem [shape: f32[64,16], index: 1, kind: input, shape index: {}]
  %s2 = inlined_call_operand.vmem [shape: f32[16,64], index: 2, kind: input, shape index: {}]
  %s3 = inlined_call_operand.vmem [shape: f32[2,64,256], index: 3, kind: output, shape index: {}]
  %s4 = sld [smem:[#allocation0]]
  $region45: #{se_module.1} parent=0
    _
  %s6 = ssub.s32 1, %s4
  %s7 = scalar_select 0, %s6, %s4
  loop: start=0, step=1, limit=4
  $region2: #{se_module.1} parent=0 // loop_pre_header
    _
  $region3: #{se_module.1} parent=0 // loop_header
    %s9 = sphi 0, %s13
    %p10 = scmp.ge.s32.totalorder %s9, 4
    %s19 = sphi 0, %s21
    %s22 = sphi 0, %s19
    %s23 = sphi 0, %s22
    %s39 = sphi 0, %s23
    %s43 = sphi 0, %s43
    %s45 = sphi 0, %s43
    %s46 = sphi 0, %s45
    %s60 = sphi 0, %s46
    %s64 = sphi 0, %s64
    %s66 = sphi 0, %s64
    %s67 = sphi 0, %s66
    %s81 = sphi 0, %s67
    %s87 = sphi 0, %s89
    %s90 = sphi 0, %s87
    %s91 = sphi 0, %s90
    %s107 = sphi 0, %s91
  $region4: #{se_module.1} parent=0 // loop_header_branch
    %12 = sbr.rel (%p10) target = $region8
  $region5: #{se_module.1} parent=0 // loop_body
    %s14 = ssub.s32 %s9, 1
    %s15 = ssub.s32 %s9, 2
    %s16 = sadd.s32 %s9, 1
    %s17 = ssub.s32 %s9, %s16
    %p18 = scmp.eq.s32.totalorder %s17, 0
    %s20 = sadd.s32 %s19, 1
    %s21 = scalar_select %p18, %s19, %s20
    %p24 = pneg %p18
    %p25 = scmp.eq.s32.totalorder %s9, 1
    %p26 = por %p24, %p25
    %p27 = scmp.ne.s32.totalorder %s19, %s22
    %p28 = scmp.eq.s32.totalorder %s9, 0
    %p29 = por %p27, %p28
    %p30 = scmp.ne.s32.totalorder %s19, %s22
    %p31 = scmp.eq.s32.totalorder %s14, 1
    %p32 = por %p30, %p31
    %p33 = scmp.ne.s32.totalorder %s22, %s23
    %p34 = scmp.eq.s32.totalorder %s14, 0
    %p35 = por %p33, %p34
    %p36 = scmp.ne.s32.totalorder %s22, %s23
    %p37 = scmp.eq.s32.totalorder %s15, 1
    %p38 = por %p36, %p37
    %p40 = scmp.ne.s32.totalorder %s23, %s39
    %p41 = scmp.eq.s32.totalorder %s15, 0
    %p42 = por %p40, %p41
    %s44 = sadd.s32 %s43, 1
    %p47 = scmp.eq.s32.totalorder %s9, 1
    %p48 = scmp.ne.s32.totalorder %s43, %s45
    %p49 = scmp.eq.s32.totalorder %s9, 0
    %p50 = por %p48, %p49
    %p51 = scmp.ne.s32.totalorder %s43, %s45
    %p52 = scmp.eq.s32.totalorder %s14, 1
    %p53 = por %p51, %p52
    %p54 = scmp.ne.s32.totalorder %s45, %s46
    %p55 = scmp.eq.s32.totalorder %s14, 0
    %p56 = por %p54, %p55
    %p57 = scmp.ne.s32.totalorder %s45, %s46
    %p58 = scmp.eq.s32.totalorder %s15, 1
    %p59 = por %p57, %p58
    %p61 = scmp.ne.s32.totalorder %s46, %s60
    %p62 = scmp.eq.s32.totalorder %s15, 0
    %p63 = por %p61, %p62
    %s65 = sadd.s32 %s64, 1
    %p68 = scmp.eq.s32.totalorder %s9, 1
    %p69 = scmp.ne.s32.totalorder %s64, %s66
    %p70 = scmp.eq.s32.totalorder %s9, 0
    %p71 = por %p69, %p70
    %p72 = scmp.ne.s32.totalorder %s64, %s66
    %p73 = scmp.eq.s32.totalorder %s14, 1
    %p74 = por %p72, %p73
    %p75 = scmp.ne.s32.totalorder %s66, %s67
    %p76 = scmp.eq.s32.totalorder %s14, 0
    %p77 = por %p75, %p76
    %p78 = scmp.ne.s32.totalorder %s66, %s67
    %p79 = scmp.eq.s32.totalorder %s15, 1
    %p80 = por %p78, %p79
    %p82 = scmp.ne.s32.totalorder %s67, %s81
    %p83 = scmp.eq.s32.totalorder %s15, 0
    %p84 = por %p82, %p83
    %s85 = ssub.s32 %s9, %s16
    %p86 = scmp.eq.s32.totalorder %s85, 0
    %s88 = sadd.s32 %s87, 1
    %s89 = scalar_select %p86, %s87, %s88
    %p92 = pneg %p86
    %p93 = scmp.eq.s32.totalorder %s9, 1
    %p94 = por %p92, %p93
    %p95 = scmp.ne.s32.totalorder %s87, %s90
    %p96 = scmp.eq.s32.totalorder %s9, 0
    %p97 = por %p95, %p96
    %p98 = scmp.ne.s32.totalorder %s87, %s90
    %p99 = scmp.eq.s32.totalorder %s14, 1
    %p100 = por %p98, %p99
    %p101 = scmp.ne.s32.totalorder %s90, %s91
    %p102 = scmp.eq.s32.totalorder %s14, 0
    %p103 = por %p101, %p102
    %p104 = scmp.ne.s32.totalorder %s90, %s91
    %p105 = scmp.eq.s32.totalorder %s15, 1
    %p106 = por %p104, %p105
    %p108 = scmp.ne.s32.totalorder %s91, %s107
    %p109 = scmp.eq.s32.totalorder %s15, 0
    %p110 = por %p108, %p109
    %p111 = scmp.le.s32.totalorder 1, %s9
    %p112 = scmp.lt.s32.totalorder %s9, 3
    %p113 = pnand %p111, %p112
    %p114 = pneg %p113
    // Predicated region
    $region9: #{se_module.1} parent=5 // pred_check
      _
    $region10: #{se_module.1} parent=5 // pred_check_branch
      %116 = sbr.rel (%p113) target = $region12
    $region11: #{se_module.1} parent=5 // pred_region
      %s117 = ssub.s32 %s9, 1
      // Predicated region
      $region13: #{se_module.1} parent=11 // pred_check
        %p118 = pneg %p56
      $region14: #{se_module.1} parent=11 // pred_check_branch
        %120 = sbr.rel (%p118) target = $region16
      $region15: #{se_module.1} parent=11 // pred_region
        _
      $region16: #{se_module.1} parent=11 // pred_fallthru
        _
      // Predicated region
      $region17: #{se_module.1} parent=11 // pred_check
        %p121 = pneg %p77
      $region18: #{se_module.1} parent=11 // pred_check_branch
        %123 = sbr.rel (%p121) target = $region20
      $region19: #{se_module.1} parent=11 // pred_region
        _
      $region20: #{se_module.1} parent=11 // pred_fallthru
        _
    $region12: #{se_module.1} parent=5 // pred_fallthru
      _
    %p124 = scmp.lt.s32.totalorder %s9, 2
    // Predicated region
    $region21: #{se_module.1} parent=5 // pred_check
      %p125 = pneg %p124
    $region22: #{se_module.1} parent=5 // pred_check_branch
      %127 = sbr.rel (%p125) target = $region24
    $region23: #{se_module.1} parent=5 // pred_region
      // Predicated region
      $region25: #{se_module.1} parent=23 // pred_check
        %p128 = pneg %p29
      $region26: #{se_module.1} parent=23 // pred_check_branch
        %130 = sbr.rel (%p128) target = $region28
      $region27: #{se_module.1} parent=23 // pred_region
        %p131 = scmp.lt.s32.totalorder %s9, 1
        %s132 = scalar_select %p131, %s9, 1
        %s133 = smul.addr %s132, 16
        %s134 = smul.addr %s133, 8
        %s135 = scalar_lea.vmem %s0, %s134
      $region28: #{se_module.1} parent=23 // pred_fallthru
        _
    $region24: #{se_module.1} parent=5 // pred_fallthru
      _
    %p136 = scmp.le.s32.totalorder 1, %s9
    %p137 = scmp.lt.s32.totalorder %s9, 3
    %p138 = pnand %p136, %p137
    %p139 = pneg %p138
    // Predicated region
    $region29: #{se_module.1} parent=5 // pred_check
      _
    $region30: #{se_module.1} parent=5 // pred_check_branch
      %141 = sbr.rel (%p138) target = $region32
    $region31: #{se_module.1} parent=5 // pred_region
      %s142 = ssub.s32 %s9, 1
      %p143 = scmp.lt.s32.totalorder %s14, 1
      %s144 = scalar_select %p143, %s14, 1
      %s145 = smul.addr %s144, 16
      %s146 = smul.addr %s145, 8
      %s147 = scalar_lea.vmem %s0, %s146
      %p148 = pneg %p35
      %p149 = pneg %p32
      %p150 = pneg %p56
      %p151 = pneg %p53
      %p152 = pneg %p77
      %p153 = pneg %p74
      %p154 = pneg %p103
      %p155 = pneg %p100
      %p156 = scmp.lt.s32.totalorder %s14, 1
      %s157 = scalar_select %p156, %s14, 1
      %s158 = smul.addr %s157, 16
      %s159 = smul.addr %s158, 8
      %s160 = scalar_lea.vmem %s3, %s159
      %p161 = scmp.lt.s32.totalorder %s14, 1
      %s162 = scalar_select %p161, %s14, 1
      %s163 = smul.addr %s162, 16
      %s164 = smul.addr %s163, 8
      %s165 = scalar_lea.vmem %s0, %s164
      %p166 = scmp.lt.s32.totalorder %s14, 1
      %s167 = scalar_select %p166, %s14, 1
      %s168 = smul.addr %s167, 16
      %s169 = smul.addr %s168, 8
      %s170 = scalar_lea.vmem %s3, %s169
      %v171 = vld [vmem:[%s165] sm:$0xff]
      %v172 = vld [vmem:[%s165 + $0x8] sm:$0xff]
      %v173 = vld [vmem:[%s165 + $0x10] sm:$0xff]
      %v174 = vld [vmem:[%s165 + $0x18] sm:$0xff]
      %v175 = vld [vmem:[%s165 + $0x20] sm:$0xff]
      %v176 = vld [vmem:[%s165 + $0x28] sm:$0xff]
      %v177 = vld [vmem:[%s165 + $0x30] sm:$0xff]
      %v178 = vld [vmem:[%s165 + $0x38] sm:$0xff]
      %v179 = vld [vmem:[%s165 + $0x40] sm:$0xff]
      %v180 = vld [vmem:[%s165 + $0x48] sm:$0xff]
      %v181 = vld [vmem:[%s165 + $0x50] sm:$0xff]
      %v182 = vld [vmem:[%s165 + $0x58] sm:$0xff]
      %v183 = vld [vmem:[%s165 + $0x60] sm:$0xff]
      %v184 = vld [vmem:[%s165 + $0x68] sm:$0xff]
      %v185 = vld [vmem:[%s165 + $0x70] sm:$0xff]
      %v186 = vld [vmem:[%s165 + $0x78] sm:$0xff]
      %v187 = vadd.f32 %v171, %v172
      %188 = vadd.xlane.f32.xlu0 %v187
      %v189 = vpop.xlane.xlu0 %188
      %v190 = vadd.f32 %v173, %v174
      %191 = vadd.xlane.f32.xlu0 %v190
      %v192 = vpop.xlane.xlu0 %191
      %v193 = vadd.f32 %v175, %v176
      %194 = vadd.xlane.f32.xlu0 %v193
      %v195 = vpop.xlane.xlu0 %194
      %v196 = vadd.f32 %v177, %v178
      %197 = vadd.xlane.f32.xlu0 %v196
      %v198 = vpop.xlane.xlu0 %197
      %v199 = vadd.f32 %v179, %v180
      %200 = vadd.xlane.f32.xlu0 %v199
      %v201 = vpop.xlane.xlu0 %200
      %v202 = vadd.f32 %v181, %v182
      %203 = vadd.xlane.f32.xlu0 %v202
      %v204 = vpop.xlane.xlu0 %203
      %v205 = vadd.f32 %v183, %v184
      %206 = vadd.xlane.f32.xlu0 %v205
      %v207 = vpop.xlane.xlu0 %206
      %v208 = vadd.f32 %v185, %v186
      %209 = vadd.xlane.f32.xlu0 %v208
      %v210 = vpop.xlane.xlu0 %209
      %v211 = vmul.f32 %v189, 0.00390625
      %v212 = vmul.f32 %v192, 0.00390625
      %v213 = vmul.f32 %v195, 0.00390625
      %v214 = vmul.f32 %v198, 0.00390625
      %v215 = vmul.f32 %v201, 0.00390625
      %v216 = vmul.f32 %v204, 0.00390625
      %v217 = vmul.f32 %v207, 0.00390625
      %v218 = vmul.f32 %v210, 0.00390625
      %v219 = vld [vmem:[%s1] sm:$0xff]
      %v220 = vld [vmem:[%s1 + $0x8] sm:$0xff]
      %v221 = vld [vmem:[%s1 + $0x10] sm:$0xff]
      %v222 = vld [vmem:[%s1 + $0x18] sm:$0xff]
      %v223 = vld [vmem:[%s1 + $0x20] sm:$0xff]
      %v224 = vld [vmem:[%s1 + $0x28] sm:$0xff]
      %v225 = vld [vmem:[%s1 + $0x30] sm:$0xff]
      %v226 = vld [vmem:[%s1 + $0x38] sm:$0xff]
      %v235 = vlaneseq
      %v236 = vand.u32 %v235, 127
      %v237 = vperm.slane %v211, %v236
      %v238 = vadd.s32 %v236, 4294967288
      %v239 = vperm.slane %v212, %v238
      %vm240 = vcmask 130112
      %v241 = vsel %vm240, %v239, %v237
      %v242 = vadd.s32 %v236, 4294967280
      %v243 = vperm.slane %v213, %v242
      %vm244 = vcmask 195712
      %v245 = vsel %vm244, %v243, %v241
      %v246 = vadd.s32 %v236, 4294967272
      %v247 = vperm.slane %v214, %v246
      %vm248 = vcmask 261312
      %v249 = vsel %vm248, %v247, %v245
      %v250 = vadd.s32 %v236, 4294967264
      %v251 = vperm.slane %v215, %v250
      %vm252 = vcmask 326912
      %v253 = vsel %vm252, %v251, %v249
      %v254 = vadd.s32 %v236, 4294967256
      %v255 = vperm.slane %v216, %v254
      %vm256 = vcmask 392512
      %v257 = vsel %vm256, %v255, %v253
      %v258 = vadd.s32 %v236, 4294967248
      %v259 = vperm.slane %v217, %v258
      %vm260 = vcmask 458112
      %v261 = vsel %vm260, %v259, %v257
      %v262 = vadd.s32 %v236, 4294967240
      %v263 = vperm.slane %v218, %v262
      %vm264 = vcmask 523712
      %v265 = vsel %vm264, %v263, %v261
      %vm266 = vcmask 523264
      %v267 = vsel %vm266, %v265, 0
      %269 = vmatpush.msra.mxu0 0.0
      %270 = vmatpush.msra.mxu0 0.0
      %271 = vmatpush.msra.mxu0 0.0
      %272 = vmatpush.msra.mxu0 0.0
      %273 = vmatpush.msra.mxu0 0.0
      %274 = vmatpush.msra.mxu0 0.0
      %275 = vmatpush.msra.mxu0 0.0
      %276 = vmatpush.msra.mxu0 0.0
      %277 = vmatpush.msra.mxu0 %v226
      %278 = vmatpush.msra.mxu0 %v225
      %279 = vmatpush.msra.mxu0 %v224
      %280 = vmatpush.msra.mxu0 %v223
      %281 = vmatpush.msra.mxu0 %v222
      %282 = vmatpush.msra.mxu0 %v221
      %283 = vmatpush.msra.mxu0 %v220
      %284 = vmatpush.msra.mxu0 %v219
      %285 = vmatmul.f32.gmra.mxu0 %v267
      %v286 = vpop.f32.mrf.mxu0
      %v287 = vadd.f32 0.0, %v286
      %288 = vdwg.mxu0
      %v289 = vmax.f32 %v287, 0.0
      %v290 = vld [vmem:[%s2] sm:$0xff]
      %v291 = vld [vmem:[%s2 + $0x8] sm:$0xff]
      %vm292 = vcmask 130048
      %v294 = vsel %vm292, %v289, 0
      %296 = vmatpush.msra.mxu0 0.0
      %297 = vmatpush.msra.mxu0 0.0
      %298 = vmatpush.msra.mxu0 0.0
      %299 = vmatpush.msra.mxu0 0.0
      %300 = vmatpush.msra.mxu0 0.0
      %301 = vmatpush.msra.mxu0 0.0
      %302 = vmatpush.msra.mxu0 0.0
      %303 = vmatpush.msra.mxu0 0.0
      %304 = vmatpush.msra.mxu0 0.0
      %305 = vmatpush.msra.mxu0 0.0
      %306 = vmatpush.msra.mxu0 0.0
      %307 = vmatpush.msra.mxu0 0.0
      %308 = vmatpush.msra.mxu0 0.0
      %309 = vmatpush.msra.mxu0 0.0
      %310 = vmatpush.msra.mxu0 %v291
      %311 = vmatpush.msra.mxu0 %v290
      %312 = vmatmul.f32.gmra.mxu0 %v294
      %v313 = vpop.f32.mrf.mxu0
      %v314 = vadd.f32 0.0, %v313
      %315 = vdwg.mxu0
      %v316 = vxor.u32 %v314, 2147483648
      %v317 = vmul.f32 %v316, 1.442695
      %v318 = vpow.pop %v317
      %v319 = vadd.f32 %v318, 1.0
      %v320 = vrcp.pop %v319
      %v321 = vmul.f32 %v319, %v320
      %v322 = vsub.f32 1.0, %v321
      %v323 = vmul.f32 %v320, %v322
      %v324 = vadd.f32 %v320, %v323
      %vm325 = vweird.f32 %v319
      %vm326 = vweird.f32 %v320
      %vm327 = vmor %vm325, %vm326
      %v328 = vsel %vm327, %v320, %v324
      %v329 = vand.u32 2147483647, %v319
      %vm330 = vcmp.eq.f32.partialorder %v329, 8.507059e+37
      %v331 = vand.u32 %v319, 2147483648
      %v332 = vor.u32 1.1754944e-38, %v331
      %v333 = vsel %vm330, %v332, %v328
      %v334 = vmul.f32 1.0, %v333
      %v335 = vperm.slane %v334, 0
      %v336 = vlaneseq
      %v337 = vshrl.u32 %v336, 7
      %339 = vset.pattern.permute.xlu0 %v337
      %340 = vperm.xlu0 %339, %v335
      %v341 = vpop.permute.xlu0 %340
      %v342 = vlaneseq
      %v343 = vshrl.u32 %v342, 7
      %v344 = vadd.s32 %v343, 8
      %345 = vset.pattern.permute.xlu0 %v344
      %346 = vperm.xlu0 %345, %v335
      %v347 = vpop.permute.xlu0 %346
      %v348 = vlaneseq
      %v349 = vshrl.u32 %v348, 7
      %v350 = vadd.s32 %v349, 16
      %351 = vset.pattern.permute.xlu0 %v350
      %352 = vperm.xlu0 %351, %v335
      %v353 = vpop.permute.xlu0 %352
      %v354 = vlaneseq
      %v355 = vshrl.u32 %v354, 7
      %v356 = vadd.s32 %v355, 24
      %357 = vset.pattern.permute.xlu0 %v356
      %358 = vperm.xlu0 %357, %v335
      %v359 = vpop.permute.xlu0 %358
      %v360 = vlaneseq
      %v361 = vshrl.u32 %v360, 7
      %v362 = vadd.s32 %v361, 32
      %363 = vset.pattern.permute.xlu0 %v362
      %364 = vperm.xlu0 %363, %v335
      %v365 = vpop.permute.xlu0 %364
      %v366 = vlaneseq
      %v367 = vshrl.u32 %v366, 7
      %v368 = vadd.s32 %v367, 40
      %369 = vset.pattern.permute.xlu0 %v368
      %370 = vperm.xlu0 %369, %v335
      %v371 = vpop.permute.xlu0 %370
      %v372 = vlaneseq
      %v373 = vshrl.u32 %v372, 7
      %v374 = vadd.s32 %v373, 48
      %375 = vset.pattern.permute.xlu0 %v374
      %376 = vperm.xlu0 %375, %v335
      %v377 = vpop.permute.xlu0 %376
      %v378 = vlaneseq
      %v379 = vshrl.u32 %v378, 7
      %v380 = vadd.s32 %v379, 56
      %381 = vset.pattern.permute.xlu0 %v380
      %382 = vperm.xlu0 %381, %v335
      %v383 = vpop.permute.xlu0 %382
      %v384 = vmul.f32 %v171, %v341
      %v385 = vmul.f32 %v172, %v341
      %v386 = vmul.f32 %v173, %v347
      %v387 = vmul.f32 %v174, %v347
      %v388 = vmul.f32 %v175, %v353
      %v389 = vmul.f32 %v176, %v353
      %v390 = vmul.f32 %v177, %v359
      %v391 = vmul.f32 %v178, %v359
      %v392 = vmul.f32 %v179, %v365
      %v393 = vmul.f32 %v180, %v365
      %v394 = vmul.f32 %v181, %v371
      %v395 = vmul.f32 %v182, %v371
      %v396 = vmul.f32 %v183, %v377
      %v397 = vmul.f32 %v184, %v377
      %v398 = vmul.f32 %v185, %v383
      %v399 = vmul.f32 %v186, %v383
      %400 = vst [vmem:[%s170] sm:$0xff] %v384
      %401 = vst [vmem:[%s170 + $0x8] sm:$0xff] %v385
      %402 = vst [vmem:[%s170 + $0x10] sm:$0xff] %v386
      %403 = vst [vmem:[%s170 + $0x18] sm:$0xff] %v387
      %404 = vst [vmem:[%s170 + $0x20] sm:$0xff] %v388
      %405 = vst [vmem:[%s170 + $0x28] sm:$0xff] %v389
      %406 = vst [vmem:[%s170 + $0x30] sm:$0xff] %v390
      %407 = vst [vmem:[%s170 + $0x38] sm:$0xff] %v391
      %408 = vst [vmem:[%s170 + $0x40] sm:$0xff] %v392
      %409 = vst [vmem:[%s170 + $0x48] sm:$0xff] %v393
      %410 = vst [vmem:[%s170 + $0x50] sm:$0xff] %v394
      %411 = vst [vmem:[%s170 + $0x58] sm:$0xff] %v395
      %412 = vst [vmem:[%s170 + $0x60] sm:$0xff] %v396
      %413 = vst [vmem:[%s170 + $0x68] sm:$0xff] %v397
      %414 = vst [vmem:[%s170 + $0x70] sm:$0xff] %v398
      %415 = vst [vmem:[%s170 + $0x78] sm:$0xff] %v399
      %p416 = scmp.lt.s32.totalorder %s14, 1
      %s417 = scalar_select %p416, %s14, 1
      %s418 = smul.addr %s417, 16
      %s419 = smul.addr %s418, 8
      %s420 = scalar_lea.vmem %s3, %s419
      // Predicated region
      $region33: #{se_module.1} parent=31 // pred_check
        %p421 = pneg %p100
      $region34: #{se_module.1} parent=31 // pred_check_branch
        %423 = sbr.rel (%p421) target = $region36
      $region35: #{se_module.1} parent=31 // pred_region
        _
      $region36: #{se_module.1} parent=31 // pred_fallthru
        _
    $region32: #{se_module.1} parent=5 // pred_fallthru
      _
    %p424 = scmp.le.s32.totalorder 2, %s9
    // Predicated region
    $region37: #{se_module.1} parent=5 // pred_check
      %p425 = pneg %p424
    $region38: #{se_module.1} parent=5 // pred_check_branch
      %427 = sbr.rel (%p425) target = $region40
    $region39: #{se_module.1} parent=5 // pred_region
      %s428 = ssub.s32 %s9, 2
      // Predicated region
      $region41: #{se_module.1} parent=39 // pred_check
        %p429 = pneg %p106
      $region42: #{se_module.1} parent=39 // pred_check_branch
        %431 = sbr.rel (%p429) target = $region44
      $region43: #{se_module.1} parent=39 // pred_region
        %p432 = scmp.lt.s32.totalorder %s15, 1
        %s433 = scalar_select %p432, %s15, 1
        %s434 = smul.addr %s433, 16
        %s435 = smul.addr %s434, 8
        %s436 = scalar_lea.vmem %s3, %s435
      $region44: #{se_module.1} parent=39 // pred_fallthru
        _
    $region40: #{se_module.1} parent=5 // pred_fallthru
      _
  $region6: #{se_module.1} parent=0 // loop_footer
    %s13 = sadd.s32 1, %s9
  $region7: #{se_module.1} parent=0 // loop_footer_branch
    %8 = sbr.rel target = $region3
  $region8: #{se_module.1} parent=0 // loop_exit
    _

</llo_original>
